<compile_context>
chip_gen: v5e
topology: v5e:2x2
jax: 0.10.0
libtpu: 0.0.40
codegen_flags: <defaults>
</compile_context>

<pallas_src>
import functools

import jax
import jax.numpy as jnp
import numpy as np
from jax.experimental import pallas as pl
from jax.experimental.pallas import tpu as pltpu


_MTILE_MAX = 256          # batch tile (MXU-friendly, multiple of 128)
_KTILE_MAX = 1024         # reduction tile (multiple of 128)
_NTILE_MAX = 4096         # dict_size tile (lane dim, multiple of 128)
_X_RESIDENT_MAX_BYTES = 4 * 1024 * 1024  # keep x panel resident if <= this


def _round_up(a: int, b: int) -> int:
    return ((a + b - 1) // b) * b


def _padded_dims(k_total: int, n: int):
    """Padded (K, N) sizes -- batch-independent, shared with prepare_weights."""
    k_pad = _round_up(max(k_total, 128), 128)
    if k_pad > _KTILE_MAX:
        k_pad = _round_up(k_total, _KTILE_MAX)
    n_pad = _round_up(max(n, 128), 128)
    if n_pad > _NTILE_MAX:
        n_pad = _round_up(n, _NTILE_MAX)
    return k_pad, n_pad


def _tile_config(batch: int, k_pad: int, n_pad: int):
    """Choose (b_pad, mtile, ktile, ntile)."""
    b16 = _round_up(max(batch, 16), 16)           # multiple of 16 for bf16 packing
    if b16 <= _MTILE_MAX:
        b_pad, mtile = b16, b16
    else:
        b_pad, mtile = _round_up(batch, _MTILE_MAX), _MTILE_MAX
    ktile = min(k_pad, _KTILE_MAX)
    ntile = min(n_pad, _NTILE_MAX)
    # v7x megacore: make sure the parallel axes have >= 2 blocks when cheap.
    if (b_pad // mtile == 1) and (n_pad // ntile == 1) and (n_pad % 256 == 0):
        ntile = n_pad // 2
    return b_pad, mtile, ktile, ntile


def _crosscoder_encoder_kernel(x_ref, w_ref, b_ref, o_ref, *, ktile, x_resident):
    k = pl.program_id(2)

    @pl.when(k == 0)
    def _():
        # Fold bias into the accumulator init (saves an epilogue VPU pass).
        o_ref[...] = jnp.broadcast_to(b_ref[...], o_ref.shape)

    if x_resident:
        # x panel is resident across N/K steps; slice the current K tile.
        start = pl.multiple_of(k * ktile, 128)
        x_blk = x_ref[:, pl.ds(start, ktile)]
    else:
        x_blk = x_ref[...]

    # bf16 x bf16 -> f32 MXU accumulation directly into the resident output block.
    o_ref[...] += jnp.dot(x_blk, w_ref[...], preferred_element_type=jnp.float32)

    @pl.when(k == pl.num_programs(2) - 1)
    def _():
        o_ref[...] = jnp.maximum(o_ref[...], 0.0)


def prepare_weights(w_cat: jax.Array, compute_dtype=jnp.bfloat16) -> jax.Array:
    """One-time weight prep: pad concat-K weights to tile multiples + cast."""
    k_total, n = w_cat.shape
    k_pad, n_pad = _padded_dims(k_total, n)
    w = w_cat.astype(compute_dtype)
    if (k_pad, n_pad) != (k_total, n):
        w = jnp.pad(w, ((0, k_pad - k_total), (0, n_pad - n)))
    return w


@functools.partial(
    jax.jit,
    static_argnames=("activation_dims", "compute_dtype", "x_resident_max_bytes"),
)
def crosscoder_encoder_forward(
    x,
    w_prepared,
    bias,
    activation_dims,
    compute_dtype=jnp.bfloat16,
    x_resident_max_bytes=_X_RESIDENT_MAX_BYTES,
):
    """
    x:           (B, L, Dmax)  (single-tensor input variant of the module)
    w_prepared:  (K_pad, N_pad) from prepare_weights(concat-K weights)
    bias:        (dict_size,) f32
    """
    activation_dims = tuple(int(d) for d in activation_dims)
    B = x.shape[0]
    k_total = sum(activation_dims)
    n = bias.shape[0]

    k_pad, n_pad = _padded_dims(k_total, n)
    assert w_prepared.shape == (k_pad, n_pad), (w_prepared.shape, (k_pad, n_pad))
    b_pad, mtile, ktile, ntile = _tile_config(B, k_pad, n_pad)

    itemsize = jnp.dtype(compute_dtype).itemsize
    x_resident = mtile * k_pad * itemsize <= x_resident_max_bytes

    # Per-layer slice x[:, l, :act_dim_l], cast before concat (no extra f32
    # materialization), pad once. Exactly the module's slicing semantics.
    parts = [x[:, i, :d].astype(compute_dtype) for i, d in enumerate(activation_dims)]
    x_cat = jnp.concatenate(parts, axis=-1)
    if (b_pad, k_pad) != (B, k_total):
        x_cat = jnp.pad(x_cat, ((0, b_pad - B), (0, k_pad - k_total)))

    bias2d = bias.astype(jnp.float32).reshape(1, n)
    if n_pad != n:
        bias2d = jnp.pad(bias2d, ((0, 0), (0, n_pad - n)))

    m_blocks = b_pad // mtile
    n_blocks = n_pad // ntile
    k_blocks = k_pad // ktile

    if x_resident:
        x_spec = pl.BlockSpec((mtile, k_pad), lambda mb, nb, kb: (mb, 0))
    else:
        x_spec = pl.BlockSpec((mtile, ktile), lambda mb, nb, kb: (mb, kb))

    # Honest VMEM budget: double-buffered inputs + double-buffered output tile.
    x_tile_bytes = mtile * (k_pad if x_resident else ktile) * itemsize
    w_tile_bytes = ktile * ntile * itemsize
    b_tile_bytes = ntile * 4
    out_tile_bytes = mtile * ntile * 4
    vmem_est = 2 * (x_tile_bytes + w_tile_bytes + b_tile_bytes) + 2 * out_tile_bytes
    vmem_limit = int(min(max(vmem_est + (4 << 20), 16 << 20), 64 << 20))

    kernel = functools.partial(
        _crosscoder_encoder_kernel, ktile=ktile, x_resident=x_resident
    )

    out = pl.pallas_call(
        kernel,
        out_shape=jax.ShapeDtypeStruct((b_pad, n_pad), jnp.float32),
        grid_spec=pltpu.PrefetchScalarGridSpec(
            num_scalar_prefetch=0,
            grid=(m_blocks, n_blocks, k_blocks),  # K (reduction) last
            in_specs=[
                x_spec,
                pl.BlockSpec((ktile, ntile), lambda mb, nb, kb: (kb, nb)),
                pl.BlockSpec((1, ntile), lambda mb, nb, kb: (0, nb)),
            ],
            out_specs=pl.BlockSpec((mtile, ntile), lambda mb, nb, kb: (mb, nb)),
        ),
        compiler_params=pltpu.CompilerParams(
            dimension_semantics=("parallel", "parallel", "arbitrary"),
            vmem_limit_bytes=vmem_limit,
        ),
    )(x_cat, w_prepared, bias2d)

    return out[:B, :n]


def make_params(key, activation_dims, dict_size):
    """Kaiming-uniform-style per-layer init, concatenated along K (f32)."""
    keys = jax.random.split(key, len(activation_dims))
    bound = float(np.sqrt(6.0 / dict_size))  # torch kaiming_uniform_ fan_in = dict_size
    w_layers = [
        jax.random.uniform(keys[i], (d, dict_size), jnp.float32, -bound, bound)
        for i, d in enumerate(activation_dims)
    ]
    w_cat = jnp.concatenate(w_layers, axis=0)  # (sum act_dim_l, dict_size)
    bias = jnp.zeros((dict_size,), jnp.float32)
    return w_cat, bias


def reference_forward(x, w_cat, bias, activation_dims, cast_bf16=True):
    """Pure-JAX reference mirroring the PyTorch forward (return_no_sum=False)."""
    acc = jnp.zeros((x.shape[0], bias.shape[0]), jnp.float32)
    off = 0
    for i, d in enumerate(activation_dims):
        xi = x[:, i, :d]
        wi = w_cat[off: off + d, :]
        if cast_bf16:  # match the kernel's bf16 streaming (f32 accumulation)
            xi = xi.astype(jnp.bfloat16).astype(jnp.float32)
            wi = wi.astype(jnp.bfloat16).astype(jnp.float32)
        acc = acc + xi @ wi
        off += d
    return jnp.maximum(acc + bias, 0.0)


def _run_case(key, activation_dims, dict_size, batch,
              x_resident_max_bytes=_X_RESIDENT_MAX_BYTES, check_f32=False):
    L = len(activation_dims)
    Dmax = max(activation_dims)
    k_x, k_w = jax.random.split(key)
    x = jax.random.normal(k_x, (batch, L, Dmax), dtype=jnp.float32)
    w_cat, bias = make_params(k_w, activation_dims, dict_size)
    w_prepared = prepare_weights(w_cat)

    out = crosscoder_encoder_forward(
        x, w_prepared, bias, tuple(activation_dims),
        x_resident_max_bytes=x_resident_max_bytes,
    )
    out = jax.block_until_ready(out)

    ref = reference_forward(x, w_cat, bias, activation_dims, cast_bf16=True)
    np.testing.assert_allclose(np.asarray(out), np.asarray(ref), rtol=2e-3, atol=2e-3)

    if check_f32:  # sanity vs full-f32 (loose tol: bf16 streaming is opt-in)
        ref_f32 = reference_forward(x, w_cat, bias, activation_dims, cast_bf16=False)
        np.testing.assert_allclose(np.asarray(out), np.asarray(ref_f32),
                                   rtol=5e-2, atol=5e-2)
    return out


if __name__ == "__main__":
    key = jax.random.PRNGKey(0)
    k1, k2, k3 = jax.random.split(key, 3)

    # 1) Small shapes: single K step, N split into 2 blocks (megacore rule).
    _run_case(k1, activation_dims=(16, 32, 24), dict_size=512, batch=8,
              check_f32=True)

    # 2) K_total > KTILE: exercises multi-step K accumulation + resident-x slicing.
    _run_case(k2, activation_dims=(512, 384, 320), dict_size=640, batch=24)

    # 3) Same shapes, residency forced off: exercises the tiled-x BlockSpec path.
    _run_case(k3, activation_dims=(512, 384, 320), dict_size=640, batch=24,
              x_resident_max_bytes=0)

    print("KERNEL_OK")
</pallas_src>

<mosaic_0001>
module attributes {stable_mosaic.version = 11 : i64} {
  func.func @_crosscoder_encoder_kernel(%arg0: i32, %arg1: i32, %arg2: i32, %arg3: memref<16x128xbf16, #tpu.memory_space<vmem>>, %arg4: memref<128x256xbf16, #tpu.memory_space<vmem>>, %arg5: memref<1x256xf32, #tpu.memory_space<vmem>>, %arg6: memref<16x256xf32, #tpu.memory_space<vmem>>) attributes {dimension_semantics = [#tpu.dimension_semantics<parallel>, #tpu.dimension_semantics<parallel>, #tpu.dimension_semantics<arbitrary>], iteration_bounds = array<i64: 1, 2, 1>, scalar_prefetch = 0 : i64, scratch_operands = 0 : i64, tpu.core_type = #tpu.core_type<tc>, window_params = [{transform_indices = @transform_0, window_bounds = array<i64: 16, 128>}, {transform_indices = @transform_1, window_bounds = array<i64: 128, 256>}, {transform_indices = @transform_2, window_bounds = array<i64: 1, 256>}, {transform_indices = @transform_3, window_bounds = array<i64: 16, 256>}]} {
    %c0_i32 = arith.constant 0 : i32
    %0 = arith.cmpi eq, %arg2, %c0_i32 : i32
    %1 = arith.extui %0 : i1 to i32
    %c0_i32_0 = arith.constant 0 : i32
    %2 = arith.cmpi ne, %1, %c0_i32_0 : i32
    scf.if %2 {
      %c0_9 = arith.constant 0 : index
      %c0_10 = arith.constant 0 : index
      %15 = vector.load %arg5[%c0_9, %c0_10] : memref<1x256xf32, #tpu.memory_space<vmem>>, vector<1x256xf32>
      %16 = vector.shape_cast %15 : vector<1x256xf32> to vector<1x256xf32>
      %17 = vector.broadcast %16 : vector<1x256xf32> to vector<16x256xf32>
      %c0_11 = arith.constant 0 : index
      %c0_12 = arith.constant 0 : index
      %18 = vector.load %arg6[%c0_11, %c0_12] : memref<16x256xf32, #tpu.memory_space<vmem>>, vector<16x256xf32>
      tpu.vector_store %arg6[%c0_11, %c0_12], %17 {strides = array<i32>} : memref<16x256xf32, #tpu.memory_space<vmem>>, vector<16x256xf32>,
    } else {
    }
    %c128_i32 = arith.constant 128 : i32
    %3 = arith.muli %arg2, %c128_i32 : i32
    %4 = tpu.assume_multiple %3, 128 : i32
    %c0 = arith.constant 0 : index
    %5 = arith.index_cast %4 : i32 to index
    %6 = vector.load %arg3[%c0, %5] : memref<16x128xbf16, #tpu.memory_space<vmem>>, vector<16x128xbf16>
    %c0_1 = arith.constant 0 : index
    %c0_2 = arith.constant 0 : index
    %7 = vector.load %arg6[%c0_1, %c0_2] : memref<16x256xf32, #tpu.memory_space<vmem>>, vector<16x256xf32>
    %c0_3 = arith.constant 0 : index
    %c0_4 = arith.constant 0 : index
    %8 = vector.load %arg4[%c0_3, %c0_4] : memref<128x256xbf16, #tpu.memory_space<vmem>>, vector<128x256xbf16>
    %cst = arith.constant dense<0.000000e+00> : vector<16x256xf32>
    %9 = tpu.matmul %6, %8, %cst {dimension_numbers = #tpu.dot_dimension_numbers<[1], [0], [0], [1], [0, 0, 1, 1], [], []>} : vector<16x128xbf16>, vector<128x256xbf16>, vector<16x256xf32> -> vector<16x256xf32>
    %10 = arith.addf %7, %9 : vector<16x256xf32>
    %c0_5 = arith.constant 0 : index
    %c0_6 = arith.constant 0 : index
    %11 = vector.load %arg6[%c0_5, %c0_6] : memref<16x256xf32, #tpu.memory_space<vmem>>, vector<16x256xf32>
    tpu.vector_store %arg6[%c0_5, %c0_6], %10 {strides = array<i32>} : memref<16x256xf32, #tpu.memory_space<vmem>>, vector<16x256xf32>,
    %c0_i32_7 = arith.constant 0 : i32
    %12 = arith.cmpi eq, %arg2, %c0_i32_7 : i32
    %13 = arith.extui %12 : i1 to i32
    %c0_i32_8 = arith.constant 0 : i32
    %14 = arith.cmpi ne, %13, %c0_i32_8 : i32
    scf.if %14 {
      %c0_9 = arith.constant 0 : index
      %c0_10 = arith.constant 0 : index
      %15 = vector.load %arg6[%c0_9, %c0_10] : memref<16x256xf32, #tpu.memory_space<vmem>>, vector<16x256xf32>
      %cst_11 = arith.constant 0.000000e+00 : f32
      %16 = vector.broadcast %cst_11 : f32 to vector<16x256xf32>
      %17 = arith.maximumf %15, %16 : vector<16x256xf32>
      %c0_12 = arith.constant 0 : index
      %c0_13 = arith.constant 0 : index
      %18 = vector.load %arg6[%c0_12, %c0_13] : memref<16x256xf32, #tpu.memory_space<vmem>>, vector<16x256xf32>
      tpu.vector_store %arg6[%c0_12, %c0_13], %17 {strides = array<i32>} : memref<16x256xf32, #tpu.memory_space<vmem>>, vector<16x256xf32>,
    } else {
    }
    return
  }
  func.func @transform_0(%arg0: i32, %arg1: i32, %arg2: i32) -> (i32, i32) {
    %c0_i32 = arith.constant 0 : i32
    %c0_i32_0 = arith.constant 0 : i32
    return %arg0, %c0_i32 : i32, i32
  }
  func.func @transform_1(%arg0: i32, %arg1: i32, %arg2: i32) -> (i32, i32) {
    %c0_i32 = arith.constant 0 : i32
    return %arg2, %arg1 : i32, i32
  }
  func.func @transform_2(%arg0: i32, %arg1: i32, %arg2: i32) -> (i32, i32) {
    %c0_i32 = arith.constant 0 : i32
    %c0_i32_0 = arith.constant 0 : i32
    return %c0_i32, %arg1 : i32, i32
  }
  func.func @transform_3(%arg0: i32, %arg1: i32, %arg2: i32) -> (i32, i32) {
    %c0_i32 = arith.constant 0 : i32
    return %arg0, %arg1 : i32, i32
  }
}

</mosaic_0001>

<llo_original>
// kernel: crosscoder_encoder_forward.1
$region0: #{crosscoder_encoder_forward.1}
  #allocation0 [shape = 'u32[]', space=smem, size = 0x4, offset = 0x4, fixed_abs, tag = 'smem constant byte address 0x4 - core index']
  #allocation1 [shape = 'u32[72,128]{1,0:T(1,128)}', space=vmem, size = 0x9000, scoped, tag = 'internal scratch']
  %s0 = inlined_call_operand.vmem [shape: bf16[16,128], index: 0, kind: input, shape index: {}]
  %s1 = inlined_call_operand.hbm [shape: bf16[128,512], index: 1, kind: input, shape index: {}]
  %s2 = inlined_call_operand.vmem [shape: f32[1,512], index: 2, kind: input, shape index: {}]
  %s3 = inlined_call_operand.vmem [shape: f32[16,512], index: 3, kind: output, shape index: {}]
  %s4 = sld [smem:[#allocation0]]
  $region76: #{crosscoder_encoder_forward.1} parent=0
    _
  %s6 = ssub.s32 1, %s4
  %s7 = scalar_select 0, %s6, %s4
  $region1: #{crosscoder_encoder_forward.1} parent=0
    #allocation2 [shape = 'u8[131072]{0}', space=vmem, size = 0x20000, scoped, tag = 'input window, operand 1']
    #allocation3 [shape = 's32[2]{0}', space=sflag, size = 0x8, scoped, tag = 'scoped memory for crosscoder_encoder_forward.1']
    #allocation4 [shape = 'u8[32768]{0}', space=vmem, size = 0x8000, scoped, tag = 'output window, operand 0']
    %8 = vsyncpa [#allocation3], 0
    %s9 = scalar_lea.sflag [#allocation3], 1
    %10 = vsyncpa %s9, 0
    loop: start=0, step=1, limit=4
    $region2: #{crosscoder_encoder_forward.1} parent=1 // loop_pre_header
      _
    $region3: #{crosscoder_encoder_forward.1} parent=1 // loop_header
      %s12 = sphi 0, %s16
      %p13 = scmp.ge.s32.totalorder %s12, 4
      %s19 = sphi 0, %s38
      %s20 = sphi 0, %s34
      %s21 = sphi 0, %s30
      %s22 = sphi 0, %s19
      %s23 = sphi 0, %s20
      %s24 = sphi 0, %s21
      %s25 = sphi 0, %s22
      %s26 = sphi 0, %s23
      %s27 = sphi 0, %s24
      %s41 = sphi 0, %s43
      %s44 = sphi 0, %s41
      %s45 = sphi 0, %s44
      %s61 = sphi 0, %s45
      %s69 = sphi 0, %s71
      %s72 = sphi 0, %s69
      %s73 = sphi 0, %s72
      %s89 = sphi 0, %s73
      %s95 = sphi 0, %s97
      %s98 = sphi 0, %s95
      %s99 = sphi 0, %s98
      %s115 = sphi 0, %s99
      %s123 = sphi 0, %s125
      %s126 = sphi 0, %s123
      %s127 = sphi 0, %s126
      %s143 = sphi 0, %s127
    $region4: #{crosscoder_encoder_forward.1} parent=1 // loop_header_branch
      %15 = sbr.rel (%p13) target = $region8
    $region5: #{crosscoder_encoder_forward.1} parent=1 // loop_body
      %s17 = ssub.s32 %s12, 1
      %s18 = ssub.s32 %s12, 2
      %s28 = sadd.s32 1, %s21
      %p29 = scmp.ge.s32.totalorder %s28, 1
      %s30 = scalar_select %p29, 0, %s28
      %s31 = sadd.s32 1, %s20
      %s32 = scalar_select %p29, %s31, %s20
      %p33 = scmp.ge.s32.totalorder %s32, 2
      %s34 = scalar_select %p33, 0, %s32
      %s35 = sadd.s32 1, %s19
      %s36 = scalar_select %p33, %s35, %s19
      %p37 = scmp.ge.s32.totalorder %s36, 1
      %s38 = scalar_select %p37, 0, %s36
      %s39 = ssub.s32 %s19, %s38
      %p40 = scmp.eq.s32.totalorder %s39, 0
      %s42 = sadd.s32 %s41, 1
      %s43 = scalar_select %p40, %s41, %s42
      %p46 = pneg %p40
      %p47 = scmp.eq.s32.totalorder %s12, 1
      %p48 = por %p46, %p47
      %p49 = scmp.ne.s32.totalorder %s41, %s44
      %p50 = scmp.eq.s32.totalorder %s12, 0
      %p51 = por %p49, %p50
      %p52 = scmp.ne.s32.totalorder %s41, %s44
      %p53 = scmp.eq.s32.totalorder %s17, 1
      %p54 = por %p52, %p53
      %p55 = scmp.ne.s32.totalorder %s44, %s45
      %p56 = scmp.eq.s32.totalorder %s17, 0
      %p57 = por %p55, %p56
      %p58 = scmp.ne.s32.totalorder %s44, %s45
      %p59 = scmp.eq.s32.totalorder %s18, 1
      %p60 = por %p58, %p59
      %p62 = scmp.ne.s32.totalorder %s45, %s61
      %p63 = scmp.eq.s32.totalorder %s18, 0
      %p64 = por %p62, %p63
      %s65 = ssub.s32 %s21, %s30
      %s66 = ssub.s32 %s20, %s34
      %s67 = sor.u32 %s65, %s66
      %p68 = scmp.eq.s32.totalorder %s67, 0
      %s70 = sadd.s32 %s69, 1
      %s71 = scalar_select %p68, %s69, %s70
      %p74 = pneg %p68
      %p75 = scmp.eq.s32.totalorder %s12, 1
      %p76 = por %p74, %p75
      %p77 = scmp.ne.s32.totalorder %s69, %s72
      %p78 = scmp.eq.s32.totalorder %s12, 0
      %p79 = por %p77, %p78
      %p80 = scmp.ne.s32.totalorder %s69, %s72
      %p81 = scmp.eq.s32.totalorder %s17, 1
      %p82 = por %p80, %p81
      %p83 = scmp.ne.s32.totalorder %s72, %s73
      %p84 = scmp.eq.s32.totalorder %s17, 0
      %p85 = por %p83, %p84
      %p86 = scmp.ne.s32.totalorder %s72, %s73
      %p87 = scmp.eq.s32.totalorder %s18, 1
      %p88 = por %p86, %p87
      %p90 = scmp.ne.s32.totalorder %s73, %s89
      %p91 = scmp.eq.s32.totalorder %s18, 0
      %p92 = por %p90, %p91
      %s93 = ssub.s32 %s20, %s34
      %p94 = scmp.eq.s32.totalorder %s93, 0
      %s96 = sadd.s32 %s95, 1
      %s97 = scalar_select %p94, %s95, %s96
      %p100 = pneg %p94
      %p101 = scmp.eq.s32.totalorder %s12, 1
      %p102 = por %p100, %p101
      %p103 = scmp.ne.s32.totalorder %s95, %s98
      %p104 = scmp.eq.s32.totalorder %s12, 0
      %p105 = por %p103, %p104
      %p106 = scmp.ne.s32.totalorder %s95, %s98
      %p107 = scmp.eq.s32.totalorder %s17, 1
      %p108 = por %p106, %p107
      %p109 = scmp.ne.s32.totalorder %s98, %s99
      %p110 = scmp.eq.s32.totalorder %s17, 0
      %p111 = por %p109, %p110
      %p112 = scmp.ne.s32.totalorder %s98, %s99
      %p113 = scmp.eq.s32.totalorder %s18, 1
      %p114 = por %p112, %p113
      %p116 = scmp.ne.s32.totalorder %s99, %s115
      %p117 = scmp.eq.s32.totalorder %s18, 0
      %p118 = por %p116, %p117
      %s119 = ssub.s32 %s19, %s38
      %s120 = ssub.s32 %s20, %s34
      %s121 = sor.u32 %s119, %s120
      %p122 = scmp.eq.s32.totalorder %s121, 0
      %s124 = sadd.s32 %s123, 1
      %s125 = scalar_select %p122, %s123, %s124
      %p128 = pneg %p122
      %p129 = scmp.eq.s32.totalorder %s12, 1
      %p130 = por %p128, %p129
      %p131 = scmp.ne.s32.totalorder %s123, %s126
      %p132 = scmp.eq.s32.totalorder %s12, 0
      %p133 = por %p131, %p132
      %p134 = scmp.ne.s32.totalorder %s123, %s126
      %p135 = scmp.eq.s32.totalorder %s17, 1
      %p136 = por %p134, %p135
      %p137 = scmp.ne.s32.totalorder %s126, %s127
      %p138 = scmp.eq.s32.totalorder %s17, 0
      %p139 = por %p137, %p138
      %p140 = scmp.ne.s32.totalorder %s126, %s127
      %p141 = scmp.eq.s32.totalorder %s18, 1
      %p142 = por %p140, %p141
      %p144 = scmp.ne.s32.totalorder %s127, %s143
      %p145 = scmp.eq.s32.totalorder %s18, 0
      %p146 = por %p144, %p145
      %p147 = scmp.le.s32.totalorder 1, %s12
      %p148 = scmp.lt.s32.totalorder %s12, 3
      %p149 = pnand %p147, %p148
      %p150 = pneg %p149
      // Predicated region
      $region9: #{crosscoder_encoder_forward.1} parent=5 // pred_check
        _
      $region10: #{crosscoder_encoder_forward.1} parent=5 // pred_check_branch
        %152 = sbr.rel (%p149) target = $region12
      $region11: #{crosscoder_encoder_forward.1} parent=5 // pred_region
        %s153 = ssub.s32 %s12, 1
        // Predicated region
        $region13: #{crosscoder_encoder_forward.1} parent=11 // pred_check
          %p154 = pneg %p57
        $region14: #{crosscoder_encoder_forward.1} parent=11 // pred_check_branch
          %156 = sbr.rel (%p154) target = $region16
        $region15: #{crosscoder_encoder_forward.1} parent=11 // pred_region
          %s157 = smul.u32 2, %s22
          %p158 = scmp.lt.s32.totalorder %s157, 1
          %s159 = scalar_select %p158, %s157, 1
          %s160 = smul.addr %s159, 4
          %s161 = scalar_lea.vmem %s0, %s160
          %s162 = smul.u32 2, %s22
        $region16: #{crosscoder_encoder_forward.1} parent=11 // pred_fallthru
          _
      $region12: #{crosscoder_encoder_forward.1} parent=5 // pred_fallthru
        _
      %p163 = scmp.lt.s32.totalorder %s12, 2
      // Predicated region
      $region17: #{crosscoder_encoder_forward.1} parent=5 // pred_check
        %p164 = pneg %p163
      $region18: #{crosscoder_encoder_forward.1} parent=5 // pred_check_branch
        %166 = sbr.rel (%p164) target = $region20
      $region19: #{crosscoder_encoder_forward.1} parent=5 // pred_region
        // Predicated region
        $region21: #{crosscoder_encoder_forward.1} parent=19 // pred_check
          %p167 = pneg %p79
        $region22: #{crosscoder_encoder_forward.1} parent=19 // pred_check_branch
          %169 = sbr.rel (%p167) target = $region24
        $region23: #{crosscoder_encoder_forward.1} parent=19 // pred_region
          %s170 = sand.u32 %s69, 1
          %s171 = scalar_lea.sflag [#allocation3], %s170
          %s172 = sand.u32 %s69, 1
          %s173 = smul.addr %s172, 128
          %s174 = scalar_lea.vmem [#allocation2], %s173
          %s175 = smul.u32 16, %s21
          %s176 = smul.u32 2, %s20
          %178 = vsyncadd %s171, 0
          %s179 = smul.addr %s175, 4
          %s180 = sadd.s32 %s176, %s179
          %s181 = smul.addr %s180, 4
          %s182 = scalar_lea.hbm %s1, %s181
          %s183 = sshll.u32 %s182, 4
          %s184 = int_to_ptr.hbm [resolvable:$true] %s183
          %s185 = sshll.u32 %s174, 4
          %s186 = int_to_ptr.vmem [resolvable:$true] %s185
          %191 = dma.hbm_to_vmem [thread:$0]  %s184, 2048, %s186, %s171, 256, 128, 8
        $region24: #{crosscoder_encoder_forward.1} parent=19 // pred_fallthru
          _
        // Predicated region
        $region25: #{crosscoder_encoder_forward.1} parent=19 // pred_check
          %p192 = pneg %p105
        $region26: #{crosscoder_encoder_forward.1} parent=19 // pred_check_branch
          %194 = sbr.rel (%p192) target = $region28
        $region27: #{crosscoder_encoder_forward.1} parent=19 // pred_region
          %s195 = smul.u32 2, %s20
          %p196 = scmp.lt.s32.totalorder %s195, 3
          %s197 = scalar_select %p196, %s195, 3
          %s198 = scalar_lea.vmem %s2, %s197
          %s199 = smul.u32 2, %s20
        $region28: #{crosscoder_encoder_forward.1} parent=19 // pred_fallthru
          _
      $region20: #{crosscoder_encoder_forward.1} parent=5 // pred_fallthru
        _
      %p200 = scmp.le.s32.totalorder 1, %s12
      %p201 = scmp.lt.s32.totalorder %s12, 3
      %p202 = pnand %p200, %p201
      %p203 = pneg %p202
      // Predicated region
      $region29: #{crosscoder_encoder_forward.1} parent=5 // pred_check
        _
      $region30: #{crosscoder_encoder_forward.1} parent=5 // pred_check_branch
        %205 = sbr.rel (%p202) target = $region32
      $region31: #{crosscoder_encoder_forward.1} parent=5 // pred_region
        %s206 = ssub.s32 %s12, 1
        %s207 = sand.u32 %s72, 1
        %s208 = scalar_lea.sflag [#allocation3], %s207
        %s209 = sand.u32 %s72, 1
        %s210 = smul.addr %s209, 128
        %s211 = scalar_lea.vmem [#allocation2], %s210
        // Predicated region
        $region33: #{crosscoder_encoder_forward.1} parent=31 // pred_check
          %p212 = pneg %p85
        $region34: #{crosscoder_encoder_forward.1} parent=31 // pred_check_branch
          %214 = sbr.rel (%p212) target = $region36
        $region35: #{crosscoder_encoder_forward.1} parent=31 // pred_region
          %216 = dma.done %s208, 2048
        $region36: #{crosscoder_encoder_forward.1} parent=31 // pred_fallthru
          _
        %s217 = smul.u32 2, %s22
        %p218 = scmp.lt.s32.totalorder %s217, 1
        %s219 = scalar_select %p218, %s217, 1
        %s220 = smul.addr %s219, 4
        %s221 = scalar_lea.vmem %s0, %s220
        %p222 = pneg %p57
        %p223 = pneg %p54
        %s224 = sand.u32 %s72, 1
        %s225 = scalar_lea.sflag [#allocation3], %s224
        %s226 = sand.u32 %s72, 1
        %s227 = smul.addr %s226, 128
        %s228 = scalar_lea.vmem [#allocation2], %s227
        %p229 = pneg %p85
        %p230 = pneg %p82
        %s231 = smul.u32 2, %s23
        %p232 = scmp.lt.s32.totalorder %s231, 3
        %s233 = scalar_select %p232, %s231, 3
        %s234 = scalar_lea.vmem %s2, %s233
        %p235 = pneg %p111
        %p236 = pneg %p108
        %p237 = pneg %p139
        %p238 = pneg %p136
        %s239 = sand.u32 %s126, 1
        %s240 = sand.u32 %s126, 1
        %s241 = smul.addr %s240, 32
        %s242 = scalar_lea.vmem [#allocation4], %s241
        %s243 = smul.u32 2, %s22
        %p244 = scmp.lt.s32.totalorder %s243, 1
        %s245 = scalar_select %p244, %s243, 1
        %s246 = smul.addr %s245, 4
        %s247 = scalar_lea.vmem %s0, %s246
        %s248 = smul.u32 2, %s22
        %s249 = smul.u32 16, %s24
        %s250 = smul.u32 2, %s23
        %s251 = smul.u32 2, %s23
        %p252 = scmp.lt.s32.totalorder %s251, 3
        %s253 = scalar_select %p252, %s251, 3
        %s254 = scalar_lea.vmem %s2, %s253
        %s255 = smul.u32 2, %s23
        %s256 = smul.u32 2, %s22
        %s257 = smul.u32 2, %s23
        %p258 = scmp.eq.s32.totalorder %s24, 0
        // Predicated region
        $region37: #{crosscoder_encoder_forward.1} parent=31 // pred_check
          %p259 = pneg %p258
        $region38: #{crosscoder_encoder_forward.1} parent=31 // pred_check_branch
          %261 = sbr.rel (%p259) target = $region40
        $region39: #{crosscoder_encoder_forward.1} parent=31 // pred_region
          %v262 = vld [vmem:[%s254] sm:$0x3]
          %v264 = vperm.slane %v262, 0
          %v265 = vperm.slane %v262, 1
          %268 = vst [vmem:[%s242] sm:$0xff] %v264
          %269 = vst [vmem:[%s242 + $0x8] sm:$0xff] %v265
          %270 = vst [vmem:[%s242 + $0x10] sm:$0xff] %v264
          %271 = vst [vmem:[%s242 + $0x18] sm:$0xff] %v265
        $region40: #{crosscoder_encoder_forward.1} parent=31 // pred_fallthru
          _
        %s272 = smul.u32 %s24, 128
        %s273 = sshra.s32 %s272, 7
        %s274 = sand.u32 %s272, 127
        %s275 = smul.addr %s273, 4
        %s276 = scalar_lea.vmem %s247, %s275
        %v277 = vld [vmem:[%s276] sm:$0xf]
        %v278 = vld [vmem:[%s276 + $0x4] sm:$0xf]
        %v279 = vld [vmem:[%s242] sm:$0xff]
        %v280 = vld [vmem:[%s242 + $0x8] sm:$0xff]
        %v281 = vld [vmem:[%s242 + $0x10] sm:$0xff]
        %v282 = vld [vmem:[%s242 + $0x18] sm:$0xff]
        %v283 = vld [vmem:[%s211] sm:$0xff]
        %v284 = vld [vmem:[%s211 + $0x8] sm:$0xff]
        %v285 = vld [vmem:[%s211 + $0x10] sm:$0xff]
        %v286 = vld [vmem:[%s211 + $0x18] sm:$0xff]
        %v287 = vld [vmem:[%s211 + $0x20] sm:$0xff]
        %v288 = vld [vmem:[%s211 + $0x28] sm:$0xff]
        %v289 = vld [vmem:[%s211 + $0x30] sm:$0xff]
        %v290 = vld [vmem:[%s211 + $0x38] sm:$0xff]
        %v291 = vld [vmem:[%s211 + $0x40] sm:$0xff]
        %v292 = vld [vmem:[%s211 + $0x48] sm:$0xff]
        %v293 = vld [vmem:[%s211 + $0x50] sm:$0xff]
        %v294 = vld [vmem:[%s211 + $0x58] sm:$0xff]
        %v295 = vld [vmem:[%s211 + $0x60] sm:$0xff]
        %v296 = vld [vmem:[%s211 + $0x68] sm:$0xff]
        %v297 = vld [vmem:[%s211 + $0x70] sm:$0xff]
        %v298 = vld [vmem:[%s211 + $0x78] sm:$0xff]
        %v301 = vunpack.c.l.b16 %v277
        %v302 = vunpack.c.l.b16 %v278
        %v303 = vpack.c.b16 %v302, %v301
        %v321 = vunpack.c.l.b16 %v283
        %v322 = vunpack.c.h.b16 %v283
        %v323 = vunpack.c.l.b16 %v284
        %v324 = vunpack.c.h.b16 %v284
        %v325 = vunpack.c.l.b16 %v285
        %v326 = vunpack.c.h.b16 %v285
        %v327 = vunpack.c.l.b16 %v286
        %v328 = vunpack.c.h.b16 %v286
        %v329 = vunpack.c.l.b16 %v287
        %v330 = vunpack.c.h.b16 %v287
        %v331 = vunpack.c.l.b16 %v288
        %v332 = vunpack.c.h.b16 %v288
        %v333 = vunpack.c.l.b16 %v289
        %v334 = vunpack.c.h.b16 %v289
        %v335 = vunpack.c.l.b16 %v290
        %v336 = vunpack.c.h.b16 %v290
        %v337 = vunpack.c.l.b16 %v291
        %v338 = vunpack.c.h.b16 %v291
        %v339 = vunpack.c.l.b16 %v292
        %v340 = vunpack.c.h.b16 %v292
        %v341 = vunpack.c.l.b16 %v293
        %v342 = vunpack.c.h.b16 %v293
        %v343 = vunpack.c.l.b16 %v294
        %v344 = vunpack.c.h.b16 %v294
        %v345 = vunpack.c.l.b16 %v295
        %v346 = vunpack.c.h.b16 %v295
        %v347 = vunpack.c.l.b16 %v296
        %v348 = vunpack.c.h.b16 %v296
        %v349 = vunpack.c.l.b16 %v297
        %v350 = vunpack.c.h.b16 %v297
        %v351 = vunpack.c.l.b16 %v298
        %v352 = vunpack.c.h.b16 %v298
        %v353 = vpack.c.b16 %v323, %v321
        %v354 = vpack.c.b16 %v324, %v322
        %v355 = vpack.c.b16 %v327, %v325
        %v356 = vpack.c.b16 %v328, %v326
        %v357 = vpack.c.b16 %v331, %v329
        %v358 = vpack.c.b16 %v332, %v330
        %v359 = vpack.c.b16 %v335, %v333
        %v360 = vpack.c.b16 %v336, %v334
        %v361 = vpack.c.b16 %v339, %v337
        %v362 = vpack.c.b16 %v340, %v338
        %v363 = vpack.c.b16 %v343, %v341
        %v364 = vpack.c.b16 %v344, %v342
        %v365 = vpack.c.b16 %v347, %v345
        %v366 = vpack.c.b16 %v348, %v346
        %v367 = vpack.c.b16 %v351, %v349
        %v368 = vpack.c.b16 %v352, %v350
        %385 = vmatpush.bf16.msra.mxu0 %v367
        %386 = vmatpush.bf16.msra.mxu0 %v365
        %387 = vmatpush.bf16.msra.mxu0 %v363
        %388 = vmatpush.bf16.msra.mxu0 %v361
        %389 = vmatpush.bf16.msra.mxu0 %v359
        %390 = vmatpush.bf16.msra.mxu0 %v357
        %391 = vmatpush.bf16.msra.mxu0 %v355
        %392 = vmatpush.bf16.msra.mxu0 %v353
        %393 = vmatmul.bf16.gmra.mxu0 %v303
        %v394 = vpop.f32.mrf.mxu0
        %v395 = vadd.f32 0.0, %v394
        %v396 = vpop.f32.mrf.mxu0
        %v397 = vadd.f32 0.0, %v396
        %398 = vdwg.mxu0
        %399 = vmatpush.bf16.msra.mxu0 %v368
        %400 = vmatpush.bf16.msra.mxu0 %v366
        %401 = vmatpush.bf16.msra.mxu0 %v364
        %402 = vmatpush.bf16.msra.mxu0 %v362
        %403 = vmatpush.bf16.msra.mxu0 %v360
        %404 = vmatpush.bf16.msra.mxu0 %v358
        %405 = vmatpush.bf16.msra.mxu0 %v356
        %406 = vmatpush.bf16.msra.mxu0 %v354
        %407 = vmatmul.bf16.gmra.mxu0 %v303
        %v408 = vpop.f32.mrf.mxu0
        %v409 = vadd.f32 0.0, %v408
        %v410 = vpop.f32.mrf.mxu0
        %v411 = vadd.f32 0.0, %v410
        %412 = vdwg.mxu0
        %v413 = vadd.f32 %v279, %v395
        %v414 = vadd.f32 %v280, %v409
        %v415 = vadd.f32 %v281, %v397
        %v416 = vadd.f32 %v282, %v411
        %417 = vst [vmem:[%s242] sm:$0xff] %v413
        %418 = vst [vmem:[%s242 + $0x8] sm:$0xff] %v414
        %419 = vst [vmem:[%s242 + $0x10] sm:$0xff] %v415
        %420 = vst [vmem:[%s242 + $0x18] sm:$0xff] %v416
        // Predicated region
        $region41: #{crosscoder_encoder_forward.1} parent=31 // pred_check
          %p421 = pneg %p258
        $region42: #{crosscoder_encoder_forward.1} parent=31 // pred_check_branch
          %423 = sbr.rel (%p421) target = $region44
        $region43: #{crosscoder_encoder_forward.1} parent=31 // pred_region
          %v424 = vld [vmem:[%s242] sm:$0xff]
          %v425 = vld [vmem:[%s242 + $0x8] sm:$0xff]
          %v426 = vld [vmem:[%s242 + $0x10] sm:$0xff]
          %v427 = vld [vmem:[%s242 + $0x18] sm:$0xff]
          %v428 = vmax.f32 %v424, 0.0
          %v429 = vmax.f32 %v425, 0.0
          %v430 = vmax.f32 %v426, 0.0
          %v431 = vmax.f32 %v427, 0.0
          %432 = vst [vmem:[%s242] sm:$0xff] %v428
          %433 = vst [vmem:[%s242 + $0x8] sm:$0xff] %v429
          %434 = vst [vmem:[%s242 + $0x10] sm:$0xff] %v430
          %435 = vst [vmem:[%s242 + $0x18] sm:$0xff] %v431
        $region44: #{crosscoder_encoder_forward.1} parent=31 // pred_fallthru
          _
        %s436 = sand.u32 %s126, 1
        %s437 = sand.u32 %s126, 1
        %s438 = smul.addr %s437, 32
        %s439 = scalar_lea.vmem [#allocation4], %s438
        // Predicated region
        $region45: #{crosscoder_encoder_forward.1} parent=31 // pred_check
          %p440 = pneg %p136
        $region46: #{crosscoder_encoder_forward.1} parent=31 // pred_check_branch
          %442 = sbr.rel (%p440) target = $region48
        $region47: #{crosscoder_encoder_forward.1} parent=31 // pred_region
          %s443 = smul.u32 2, %s22
          %s444 = smul.u32 2, %s23
          %s445 = smul.addr %s443, 4
          %s446 = sadd.s32 %s444, %s445
          %s447 = smul.addr %s446, 8
          %s448 = scalar_lea.vmem %s3, %s447
          // Predicated region
          $region49: #{crosscoder_encoder_forward.1} parent=47 // pred_check
            _
          $region50: #{crosscoder_encoder_forward.1} parent=47 // pred_check_branch
            %450 = sbr.rel (0) target = $region52
          $region51: #{crosscoder_encoder_forward.1} parent=47 // pred_region
            // Predicated region
            $region53: #{crosscoder_encoder_forward.1} parent=51 // pred_check
              _
            $region54: #{crosscoder_encoder_forward.1} parent=51 // pred_check_branch
              %452 = sbr.rel (0) target = $region56
            $region55: #{crosscoder_encoder_forward.1} parent=51 // pred_region
              loop: start=0, step=1, limit=1
              $region57: #{crosscoder_encoder_forward.1} parent=55 // loop_pre_header
                _
              $region58: #{crosscoder_encoder_forward.1} parent=55 // loop_header
                %s454 = sphi 0, %s458
                %p455 = scmp.ge.s32.totalorder %s454, 1
                %s459 = sphi %s439, %s439
                %s460 = sphi %s448, %s448
              $region59: #{crosscoder_encoder_forward.1} parent=55 // loop_header_branch
                %457 = sbr.rel (%p455) target = $region63
              $region60: #{crosscoder_encoder_forward.1} parent=55 // loop_body
                %v461 = vld [vmem:[%s459] sm:$0xff]
                %462 = vst [vmem:[%s460] sm:$0xff] %v461
                %v463 = vld [vmem:[%s459 + $0x8] sm:$0xff]
                %464 = vst [vmem:[%s460 + $0x8] sm:$0xff] %v463
                %v465 = vld [vmem:[%s459 + $0x10] sm:$0xff]
                %466 = vst [vmem:[%s460 + $0x20] sm:$0xff] %v465
                %v467 = vld [vmem:[%s459 + $0x18] sm:$0xff]
                %468 = vst [vmem:[%s460 + $0x28] sm:$0xff] %v467
              $region61: #{crosscoder_encoder_forward.1} parent=55 // loop_footer
                %s458 = sadd.s32 1, %s454
              $region62: #{crosscoder_encoder_forward.1} parent=55 // loop_footer_branch
                %453 = sbr.rel target = $region58
              $region63: #{crosscoder_encoder_forward.1} parent=55 // loop_exit
                _
            $region56: #{crosscoder_encoder_forward.1} parent=51 // pred_fallthru
              _
            // Predicated region
            $region64: #{crosscoder_encoder_forward.1} parent=51 // pred_check
              _
            $region65: #{crosscoder_encoder_forward.1} parent=51 // pred_check_branch
              %470 = sbr.rel target = $region67
            $region66: #{crosscoder_encoder_forward.1} parent=51 // pred_region
              _
            $region67: #{crosscoder_encoder_forward.1} parent=51 // pred_fallthru
              _
          $region52: #{crosscoder_encoder_forward.1} parent=47 // pred_fallthru
            _
          %471 = vnop
        $region48: #{crosscoder_encoder_forward.1} parent=31 // pred_fallthru
          _
      $region32: #{crosscoder_encoder_forward.1} parent=5 // pred_fallthru
        _
      %p472 = scmp.le.s32.totalorder 2, %s12
      // Predicated region
      $region68: #{crosscoder_encoder_forward.1} parent=5 // pred_check
        %p473 = pneg %p472
      $region69: #{crosscoder_encoder_forward.1} parent=5 // pred_check_branch
        %475 = sbr.rel (%p473) target = $region71
      $region70: #{crosscoder_encoder_forward.1} parent=5 // pred_region
        %s476 = ssub.s32 %s12, 2
        // Predicated region
        $region72: #{crosscoder_encoder_forward.1} parent=70 // pred_check
          %p477 = pneg %p142
        $region73: #{crosscoder_encoder_forward.1} parent=70 // pred_check_branch
          %479 = sbr.rel (%p477) target = $region75
        $region74: #{crosscoder_encoder_forward.1} parent=70 // pred_region
          %s480 = sand.u32 %s127, 1
          %s481 = sand.u32 %s127, 1
          %s482 = smul.addr %s481, 32
          %s483 = scalar_lea.vmem [#allocation4], %s482
        $region75: #{crosscoder_encoder_forward.1} parent=70 // pred_fallthru
          _
      $region71: #{crosscoder_encoder_forward.1} parent=5 // pred_fallthru
        _
    $region6: #{crosscoder_encoder_forward.1} parent=1 // loop_footer
      %s16 = sadd.s32 1, %s12
    $region7: #{crosscoder_encoder_forward.1} parent=1 // loop_footer_branch
      %11 = sbr.rel target = $region3
    $region8: #{crosscoder_encoder_forward.1} parent=1 // loop_exit
      _
    %484 = vsyncpa [#allocation3], 1
    %s485 = scalar_lea.sflag [#allocation3], 1
    %486 = vsyncpa %s485, 1

</llo_original>
